<compile_context>
chip_gen: v7x
topology: tpu7x:2x2x1
jax: 0.10.0
libtpu: 0.0.40
codegen_flags: <defaults>
</compile_context>

<pallas_src>
from functools import partial

import jax
import jax.numpy as jnp
from jax import lax
from jax.experimental import pallas as pl
from jax.experimental.pallas import tpu as pltpu


def _round_up(x, m):
    return ((x + m - 1) // m) * m


def _mlp_kernel(x_ref, w1_ref, b1_ref, w2_ref, b2_ref, o_ref, *, pack, hidden):
    """One batch tile of Linear(F,H) -> ReLU -> Linear(H,1) with `pack` batch rows
    packed along the lane/K dimension.

      x_ref : (tile_rows, pack*F)     f32/bf16  packed input rows
      w1_ref: (pack*F, pack*hidden)   bf16      block-diagonal layer-1 weight (w1^T blocks)
      b1_ref: (1, hidden)             f32
      w2_ref: (1, hidden)             f32
      b2_ref: (1, 1)                  f32
      o_ref : (tile_rows, pack)       out       o[r, p] = result for original row r*pack + p
    """
    # ---- Layer 1 on the MXU: bf16 operands, f32 accumulation.  The block-diagonal
    # weight keeps K lane-dense (pack*F wide); off-diagonal blocks are exact zeros so
    # packed rows cannot mix.
    x_bf16 = x_ref[...].astype(jnp.bfloat16)
    h = jnp.dot(x_bf16, w1_ref[...], preferred_element_type=jnp.float32)  # (tile_rows, pack*hidden)

    # ---- Bias + ReLU + layer 2 per packed slot.  Each slot is a static, 128-aligned
    # lane slice (free view); the dot with w2 is a VPU multiply + XLU lane reduction
    # rather than an N=1 MXU matmul.
    # TODO(synk): if xprof shows the XLU lane reduction binding, switch layer 2 to one
    # MXU matmul against a block-diagonal (pack*hidden, pack) w2.
    cols = []
    for p in range(pack):
        hp = h[:, p * hidden:(p + 1) * hidden]                 # (tile_rows, hidden)
        ap = jnp.maximum(hp + b1_ref[...], 0.0)                # VPU, f32
        cols.append(jnp.sum(ap * w2_ref[...], axis=-1, keepdims=True))
    out = jnp.concatenate(cols, axis=-1) + b2_ref[...]          # (tile_rows, pack)
    o_ref[...] = out.astype(o_ref.dtype)


@partial(jax.jit, static_argnames=("tile_b",))
def model1_forward(features, w1, b1, w2, b2, *, tile_b=8192):
    """features: (B, F); w1: (128, F); b1: (128,); w2: (1, 128); b2: (1,).

    `tile_b` is the *maximum* number of original batch rows per grid step; the actual
    tile scales with B (and prefers >= 2 balanced tiles for v7x megacore).
    """
    B, F = features.shape
    H = w1.shape[0]                      # 128
    out_dtype = features.dtype

    # ---- Lane/K packing factor: pack `pack` batch rows so the streamed input is
    # lane-dense (pack*F == 128) and the MXU K depth is filled.
    # TODO(synk): 8-way packing (K = 256) for v6e/v7x's 256-deep MXUs if layer-1
    # vmatmul cadence still binds after 4-way packing.
    if F <= 128 and 128 % F == 0:
        pack = 128 // F
    else:
        pack = 1
    align = 8 * pack                     # sublane alignment of a tile after packing

    # ---- Batch tiling: biggest tile (capped at tile_b) that amortizes per-step
    # overhead, scaled down so moderate batches still get >= 2 balanced tiles
    # (keeps both v7x TensorCores busy; harmless on v5e/v6e).
    max_tile = max(_round_up(tile_b, align), align)
    B_align = _round_up(B, align)
    half = _round_up(-(-B_align // 2), align)
    tile = min(max_tile, half)
    B_pad = _round_up(B_align, tile)
    num_tiles = B_pad // tile
    tile_rows = tile // pack             # packed rows per grid step

    # TODO(synk): accept bf16 `features` directly from the producer (halves the
    # dominant HBM stream; biggest win on v5e) -- the kernel already handles it.
    x = features
    if B_pad != B:
        x = jnp.pad(x, ((0, B_pad - B), (0, 0)))
    x_packed = x.reshape(B_pad // pack, pack * F)

    # ---- Weight prep (tiny; once per call, VMEM-resident across grid steps).
    # Block-diagonal layer-1 weight: W_bd[p*F:(p+1)*F, p*H:(p+1)*H] = w1^T, exact zeros
    # elsewhere (kron with the identity), cast to bf16 for the MXU.
    w1_bd = jnp.kron(jnp.eye(pack, dtype=jnp.float32),
                     w1.astype(jnp.float32).T).astype(jnp.bfloat16)    # (pack*F, pack*H)
    b1_2d = b1.reshape(1, H).astype(jnp.float32)
    w2_2d = w2.reshape(1, H).astype(jnp.float32)
    b2_2d = b2.reshape(1, 1).astype(jnp.float32)

    cost = pl.CostEstimate(
        flops=2 * B_pad * F * H + 4 * B_pad * H,
        transcendentals=0,
        bytes_accessed=(B_pad * F * features.dtype.itemsize
                        + w1_bd.size * 2
                        + (b1_2d.size + w2_2d.size + b2_2d.size) * 4
                        + B_pad * features.dtype.itemsize),
    )

    out_packed = pl.pallas_call(
        partial(_mlp_kernel, pack=pack, hidden=H),
        out_shape=jax.ShapeDtypeStruct((B_pad // pack, pack), out_dtype),
        grid=(num_tiles,),
        in_specs=[
            # x streams per batch tile, lane-dense once packing kicks in.
            # TODO(synk): add pipeline_mode=pl.Buffered(3) here if xprof still shows
            # exposed input DMA after the larger tiles.
            pl.BlockSpec((tile_rows, pack * F), lambda i: (i, 0)),
            # Weights/biases: constant index_map -> stay VMEM-resident across steps.
            pl.BlockSpec((pack * F, pack * H), lambda i: (0, 0)),
            pl.BlockSpec((1, H), lambda i: (0, 0)),
            pl.BlockSpec((1, H), lambda i: (0, 0)),
            pl.BlockSpec((1, 1), lambda i: (0, 0)),
        ],
        # Packed output block: 4 lanes per sublane row (8x fewer store ops than the old
        # (tile_b, 1) layout); wrapper reshape back to (B, 1) is a free bitcast.
        # TODO(synk): a fully lane-dense (1, tile_b) output block would need an
        # in-kernel sublane->lane relayout of the (tile_rows, pack) result; only ~3% of
        # traffic, so kept simple here.
        out_specs=pl.BlockSpec((tile_rows, pack), lambda i: (i, 0)),
        compiler_params=pltpu.CompilerParams(
            dimension_semantics=("parallel",),            # megacore sharding on v7x
            vmem_limit_bytes=32 * 1024 * 1024,            # explicit; v7x: 64 MiB/TC physical
        ),
        cost_estimate=cost,
    )(x_packed, w1_bd, b1_2d, w2_2d, b2_2d)

    out = out_packed.reshape(B_pad, 1)
    return out[:B] if B_pad != B else out


if __name__ == "__main__":
    F = 32            # num_features
    H = 128           # hidden dim (fixed by the module)
    O = 1             # output dim (fixed by the module)

    key = jax.random.PRNGKey(0)
    k_x, k_w1, k_b1, k_w2, k_b2 = jax.random.split(key, 5)

    # Deterministic parameter init (roughly nn.Linear's uniform init scale).
    w1 = jax.random.uniform(k_w1, (H, F), jnp.float32, -1.0 / F**0.5, 1.0 / F**0.5)
    b1 = jax.random.uniform(k_b1, (H,), jnp.float32, -1.0 / F**0.5, 1.0 / F**0.5)
    w2 = jax.random.uniform(k_w2, (O, H), jnp.float32, -1.0 / H**0.5, 1.0 / H**0.5)
    b2 = jax.random.uniform(k_b2, (O,), jnp.float32, -1.0 / H**0.5, 1.0 / H**0.5)

    # Case 1: default tiling (2 balanced tiles).  Case 2: small tile cap (4 tiles).
    # Case 3: ragged batch -> padding + partially-filled packed row.
    for B, tb in ((256, 8192), (256, 64), (13, 8192)):
        x = jax.random.normal(k_x, (B, F), dtype=jnp.float32)
        out = jax.block_until_ready(model1_forward(x, w1, b1, w2, b2, tile_b=tb))
        assert out.shape == (B, O), out.shape

        # f32 reference (module semantics) -- loose tolerance: layer 1 uses bf16 MXU
        # operands with f32 accumulation.
        h32 = jnp.dot(x, w1.T, precision="highest") + b1
        ref32 = jnp.dot(jnp.maximum(h32, 0.0), w2.T, precision="highest") + b2
        assert jnp.allclose(out, ref32, atol=1e-2, rtol=1e-2), "mismatch vs f32 reference"

        # Matched-precision reference (bf16 layer-1 operands, f32 accumulation).
        h_bf = lax.dot_general(x.astype(jnp.bfloat16), w1.astype(jnp.bfloat16),
                               (((1,), (1,)), ((), ())),
                               preferred_element_type=jnp.float32)
        ref_bf = jnp.sum(jnp.maximum(h_bf + b1, 0.0) * w2.reshape(1, H),
                         axis=-1, keepdims=True) + b2
        assert jnp.allclose(out, ref_bf, atol=1e-3, rtol=1e-3), "mismatch vs matched-precision reference"

    print("KERNEL_OK")
</pallas_src>

<mosaic_0001>
module attributes {stable_mosaic.version = 11 : i64} {
  func.func @_mlp_kernel(%arg0: i32, %arg1: memref<32x128xf32, #tpu.memory_space<vmem>>, %arg2: memref<128x512xbf16, #tpu.memory_space<vmem>>, %arg3: memref<1x128xf32, #tpu.memory_space<vmem>>, %arg4: memref<1x128xf32, #tpu.memory_space<vmem>>, %arg5: memref<1x1xf32, #tpu.memory_space<vmem>>, %arg6: memref<32x4xf32, #tpu.memory_space<vmem>>) attributes {dimension_semantics = [#tpu.dimension_semantics<parallel>], iteration_bounds = array<i64: 2>, scalar_prefetch = 0 : i64, scratch_operands = 0 : i64, tpu.core_type = #tpu.core_type<tc>, window_params = [{transform_indices = @transform_0, window_bounds = array<i64: 32, 128>}, {pipeline_mode = #tpu.pipeline_mode<synchronous>, transform_indices = @transform_1, window_bounds = array<i64: 128, 512>}, {pipeline_mode = #tpu.pipeline_mode<synchronous>, transform_indices = @transform_2, window_bounds = array<i64: 1, 128>}, {pipeline_mode = #tpu.pipeline_mode<synchronous>, transform_indices = @transform_3, window_bounds = array<i64: 1, 128>}, {pipeline_mode = #tpu.pipeline_mode<synchronous>, transform_indices = @transform_4, window_bounds = array<i64: 1, 1>}, {transform_indices = @transform_5, window_bounds = array<i64: 32, 4>}]} {
    %c0 = arith.constant 0 : index
    %c0_0 = arith.constant 0 : index
    %0 = vector.load %arg1[%c0, %c0_0] : memref<32x128xf32, #tpu.memory_space<vmem>>, vector<32x128xf32>
    %1 = arith.truncf %0 : vector<32x128xf32> to vector<32x128xbf16>
    %c0_1 = arith.constant 0 : index
    %c0_2 = arith.constant 0 : index
    %2 = vector.load %arg2[%c0_1, %c0_2] : memref<128x512xbf16, #tpu.memory_space<vmem>>, vector<128x512xbf16>
    %cst = arith.constant dense<0.000000e+00> : vector<32x512xf32>
    %3 = tpu.matmul %1, %2, %cst {dimension_numbers = #tpu.dot_dimension_numbers<[1], [0], [0], [1], [0, 0, 1, 1], [], []>} : vector<32x128xbf16>, vector<128x512xbf16>, vector<32x512xf32> -> vector<32x512xf32>
    %4 = vector.extract_strided_slice %3 {offsets = [0, 0], sizes = [32, 128], strides = [1, 1]} : vector<32x512xf32> to vector<32x128xf32>
    %c0_3 = arith.constant 0 : index
    %c0_4 = arith.constant 0 : index
    %5 = vector.load %arg3[%c0_3, %c0_4] : memref<1x128xf32, #tpu.memory_space<vmem>>, vector<1x128xf32>
    %6 = vector.broadcast %5 : vector<1x128xf32> to vector<32x128xf32>
    %7 = arith.addf %4, %6 : vector<32x128xf32>
    %cst_5 = arith.constant 0.000000e+00 : f32
    %8 = vector.broadcast %cst_5 : f32 to vector<32x128xf32>
    %9 = arith.maximumf %7, %8 : vector<32x128xf32>
    %c0_6 = arith.constant 0 : index
    %c0_7 = arith.constant 0 : index
    %10 = vector.load %arg4[%c0_6, %c0_7] : memref<1x128xf32, #tpu.memory_space<vmem>>, vector<1x128xf32>
    %11 = vector.broadcast %10 : vector<1x128xf32> to vector<32x128xf32>
    %12 = arith.mulf %9, %11 : vector<32x128xf32>
    %cst_8 = arith.constant dense<0.000000e+00> : vector<32xf32>
    %13 = vector.multi_reduction <add>, %12, %cst_8 [1] : vector<32x128xf32> to vector<32xf32>
    %14 = vector.shape_cast %13 : vector<32xf32> to vector<32x1xf32>
    %15 = vector.extract_strided_slice %3 {offsets = [0, 128], sizes = [32, 128], strides = [1, 1]} : vector<32x512xf32> to vector<32x128xf32>
    %c0_9 = arith.constant 0 : index
    %c0_10 = arith.constant 0 : index
    %16 = vector.load %arg3[%c0_9, %c0_10] : memref<1x128xf32, #tpu.memory_space<vmem>>, vector<1x128xf32>
    %17 = vector.broadcast %16 : vector<1x128xf32> to vector<32x128xf32>
    %18 = arith.addf %15, %17 : vector<32x128xf32>
    %cst_11 = arith.constant 0.000000e+00 : f32
    %19 = vector.broadcast %cst_11 : f32 to vector<32x128xf32>
    %20 = arith.maximumf %18, %19 : vector<32x128xf32>
    %c0_12 = arith.constant 0 : index
    %c0_13 = arith.constant 0 : index
    %21 = vector.load %arg4[%c0_12, %c0_13] : memref<1x128xf32, #tpu.memory_space<vmem>>, vector<1x128xf32>
    %22 = vector.broadcast %21 : vector<1x128xf32> to vector<32x128xf32>
    %23 = arith.mulf %20, %22 : vector<32x128xf32>
    %cst_14 = arith.constant dense<0.000000e+00> : vector<32xf32>
    %24 = vector.multi_reduction <add>, %23, %cst_14 [1] : vector<32x128xf32> to vector<32xf32>
    %25 = vector.shape_cast %24 : vector<32xf32> to vector<32x1xf32>
    %26 = vector.extract_strided_slice %3 {offsets = [0, 256], sizes = [32, 128], strides = [1, 1]} : vector<32x512xf32> to vector<32x128xf32>
    %c0_15 = arith.constant 0 : index
    %c0_16 = arith.constant 0 : index
    %27 = vector.load %arg3[%c0_15, %c0_16] : memref<1x128xf32, #tpu.memory_space<vmem>>, vector<1x128xf32>
    %28 = vector.broadcast %27 : vector<1x128xf32> to vector<32x128xf32>
    %29 = arith.addf %26, %28 : vector<32x128xf32>
    %cst_17 = arith.constant 0.000000e+00 : f32
    %30 = vector.broadcast %cst_17 : f32 to vector<32x128xf32>
    %31 = arith.maximumf %29, %30 : vector<32x128xf32>
    %c0_18 = arith.constant 0 : index
    %c0_19 = arith.constant 0 : index
    %32 = vector.load %arg4[%c0_18, %c0_19] : memref<1x128xf32, #tpu.memory_space<vmem>>, vector<1x128xf32>
    %33 = vector.broadcast %32 : vector<1x128xf32> to vector<32x128xf32>
    %34 = arith.mulf %31, %33 : vector<32x128xf32>
    %cst_20 = arith.constant dense<0.000000e+00> : vector<32xf32>
    %35 = vector.multi_reduction <add>, %34, %cst_20 [1] : vector<32x128xf32> to vector<32xf32>
    %36 = vector.shape_cast %35 : vector<32xf32> to vector<32x1xf32>
    %37 = vector.extract_strided_slice %3 {offsets = [0, 384], sizes = [32, 128], strides = [1, 1]} : vector<32x512xf32> to vector<32x128xf32>
    %c0_21 = arith.constant 0 : index
    %c0_22 = arith.constant 0 : index
    %38 = vector.load %arg3[%c0_21, %c0_22] : memref<1x128xf32, #tpu.memory_space<vmem>>, vector<1x128xf32>
    %39 = vector.broadcast %38 : vector<1x128xf32> to vector<32x128xf32>
    %40 = arith.addf %37, %39 : vector<32x128xf32>
    %cst_23 = arith.constant 0.000000e+00 : f32
    %41 = vector.broadcast %cst_23 : f32 to vector<32x128xf32>
    %42 = arith.maximumf %40, %41 : vector<32x128xf32>
    %c0_24 = arith.constant 0 : index
    %c0_25 = arith.constant 0 : index
    %43 = vector.load %arg4[%c0_24, %c0_25] : memref<1x128xf32, #tpu.memory_space<vmem>>, vector<1x128xf32>
    %44 = vector.broadcast %43 : vector<1x128xf32> to vector<32x128xf32>
    %45 = arith.mulf %42, %44 : vector<32x128xf32>
    %cst_26 = arith.constant dense<0.000000e+00> : vector<32xf32>
    %46 = vector.multi_reduction <add>, %45, %cst_26 [1] : vector<32x128xf32> to vector<32xf32>
    %47 = vector.shape_cast %46 : vector<32xf32> to vector<32x1xf32>
    %48 = tpu.concatenate %14, %25, %36, %47 in 1 : vector<32x1xf32>, vector<32x1xf32>, vector<32x1xf32>, vector<32x1xf32> -> vector<32x4xf32>
    %c0_27 = arith.constant 0 : index
    %c0_28 = arith.constant 0 : index
    %49 = vector.load %arg5[%c0_27, %c0_28] : memref<1x1xf32, #tpu.memory_space<vmem>>, vector<1x1xf32>
    %50 = vector.broadcast %49 : vector<1x1xf32> to vector<32x4xf32>
    %51 = arith.addf %48, %50 : vector<32x4xf32>
    %c0_29 = arith.constant 0 : index
    %c0_30 = arith.constant 0 : index
    %52 = vector.load %arg6[%c0_29, %c0_30] : memref<32x4xf32, #tpu.memory_space<vmem>>, vector<32x4xf32>
    tpu.vector_store %arg6[%c0_29, %c0_30], %51 {strides = array<i32>} : memref<32x4xf32, #tpu.memory_space<vmem>>, vector<32x4xf32>,
    return
  }
  func.func @transform_0(%arg0: i32) -> (i32, i32) {
    %c0_i32 = arith.constant 0 : i32
    %c0_i32_0 = arith.constant 0 : i32
    return %arg0, %c0_i32 : i32, i32
  }
  func.func @transform_1(%arg0: i32) -> (i32, i32) {
    %c0_i32 = arith.constant 0 : i32
    %c0_i32_0 = arith.constant 0 : i32
    %c0_i32_1 = arith.constant 0 : i32
    return %c0_i32, %c0_i32_0 : i32, i32
  }
  func.func @transform_2(%arg0: i32) -> (i32, i32) {
    %c0_i32 = arith.constant 0 : i32
    %c0_i32_0 = arith.constant 0 : i32
    %c0_i32_1 = arith.constant 0 : i32
    return %c0_i32, %c0_i32_0 : i32, i32
  }
  func.func @transform_3(%arg0: i32) -> (i32, i32) {
    %c0_i32 = arith.constant 0 : i32
    %c0_i32_0 = arith.constant 0 : i32
    %c0_i32_1 = arith.constant 0 : i32
    return %c0_i32, %c0_i32_0 : i32, i32
  }
  func.func @transform_4(%arg0: i32) -> (i32, i32) {
    %c0_i32 = arith.constant 0 : i32
    %c0_i32_0 = arith.constant 0 : i32
    %c0_i32_1 = arith.constant 0 : i32
    return %c0_i32, %c0_i32_0 : i32, i32
  }
  func.func @transform_5(%arg0: i32) -> (i32, i32) {
    %c0_i32 = arith.constant 0 : i32
    %c0_i32_0 = arith.constant 0 : i32
    return %arg0, %c0_i32 : i32, i32
  }
}

</mosaic_0001>

<llo_original>
// kernel: model1_forward.1
$region0: #{model1_forward.1}
  #allocation0 [shape = 'u32[]', space=smem, size = 0x4, offset = 0x4, fixed_abs, tag = 'smem constant byte address 0x4 - core index']
  #allocation1 [shape = 'u32[144,128]{1,0:T(1,128)}', space=vmem, size = 0x12000, scoped, tag = 'internal scratch']
  #allocation2 [shape = 'f32[1,1]{1,0:T(1,128)S(1)}', space=vmem, size = 0x200, scoped, tag = 'scoped memory for model1_forward.1']
  %s0 = inlined_call_operand.vmem [shape: f32[64,128], index: 0, kind: input, shape index: {}]
  %s1 = inlined_call_operand.vmem [shape: bf16[128,512], index: 1, kind: input, shape index: {}]
  %s2 = inlined_call_operand.vmem [shape: f32[1,128], index: 2, kind: input, shape index: {}]
  %s3 = inlined_call_operand.vmem [shape: f32[1,128], index: 3, kind: input, shape index: {}]
  %s4 = inlined_call_operand.<no memory space> [shape: f32[1,1], index: 4, kind: input, shape index: {}]
  %s5 = inlined_call_operand.vmem [shape: f32[64,4], index: 5, kind: output, shape index: {}]
  %s6 = sld [smem:[#allocation0]]
  $region53: #{model1_forward.1} parent=0
    _
  %s8 = ssub.s32 1, %s6
  %s9 = scalar_select 0, %s8, %s6
  %v10 = vstv %s4
  %11 = vst [vmem:[#allocation2] sm:$0x1] %v10
  loop: start=0, step=1, limit=4
  $region2: #{model1_forward.1} parent=0 // loop_pre_header
    _
  $region3: #{model1_forward.1} parent=0 // loop_header
    %s13 = sphi 0, %s17
    %p14 = scmp.ge.s32.totalorder %s13, 4
    %s23 = sphi 0, %s25
    %s26 = sphi 0, %s23
    %s27 = sphi 0, %s26
    %s43 = sphi 0, %s27
    %s47 = sphi 0, %s47
    %s49 = sphi 0, %s47
    %s50 = sphi 0, %s49
    %s64 = sphi 0, %s50
    %s68 = sphi 0, %s68
    %s70 = sphi 0, %s68
    %s71 = sphi 0, %s70
    %s85 = sphi 0, %s71
    %s89 = sphi 0, %s89
    %s91 = sphi 0, %s89
    %s92 = sphi 0, %s91
    %s106 = sphi 0, %s92
    %s110 = sphi 0, %s110
    %s112 = sphi 0, %s110
    %s113 = sphi 0, %s112
    %s127 = sphi 0, %s113
    %s133 = sphi 0, %s135
    %s136 = sphi 0, %s133
    %s137 = sphi 0, %s136
    %s153 = sphi 0, %s137
  $region4: #{model1_forward.1} parent=0 // loop_header_branch
    %16 = sbr.rel (%p14) target = $region8
  $region5: #{model1_forward.1} parent=0 // loop_body
    %s18 = ssub.s32 %s13, 1
    %s19 = ssub.s32 %s13, 2
    %s20 = sadd.s32 %s13, 1
    %s21 = ssub.s32 %s13, %s20
    %p22 = scmp.eq.s32.totalorder %s21, 0
    %s24 = sadd.s32 %s23, 1
    %s25 = scalar_select %p22, %s23, %s24
    %p28 = pneg %p22
    %p29 = scmp.eq.s32.totalorder %s13, 1
    %p30 = por %p28, %p29
    %p31 = scmp.ne.s32.totalorder %s23, %s26
    %p32 = scmp.eq.s32.totalorder %s13, 0
    %p33 = por %p31, %p32
    %p34 = scmp.ne.s32.totalorder %s23, %s26
    %p35 = scmp.eq.s32.totalorder %s18, 1
    %p36 = por %p34, %p35
    %p37 = scmp.ne.s32.totalorder %s26, %s27
    %p38 = scmp.eq.s32.totalorder %s18, 0
    %p39 = por %p37, %p38
    %p40 = scmp.ne.s32.totalorder %s26, %s27
    %p41 = scmp.eq.s32.totalorder %s19, 1
    %p42 = por %p40, %p41
    %p44 = scmp.ne.s32.totalorder %s27, %s43
    %p45 = scmp.eq.s32.totalorder %s19, 0
    %p46 = por %p44, %p45
    %s48 = sadd.s32 %s47, 1
    %p51 = scmp.eq.s32.totalorder %s13, 1
    %p52 = scmp.ne.s32.totalorder %s47, %s49
    %p53 = scmp.eq.s32.totalorder %s13, 0
    %p54 = por %p52, %p53
    %p55 = scmp.ne.s32.totalorder %s47, %s49
    %p56 = scmp.eq.s32.totalorder %s18, 1
    %p57 = por %p55, %p56
    %p58 = scmp.ne.s32.totalorder %s49, %s50
    %p59 = scmp.eq.s32.totalorder %s18, 0
    %p60 = por %p58, %p59
    %p61 = scmp.ne.s32.totalorder %s49, %s50
    %p62 = scmp.eq.s32.totalorder %s19, 1
    %p63 = por %p61, %p62
    %p65 = scmp.ne.s32.totalorder %s50, %s64
    %p66 = scmp.eq.s32.totalorder %s19, 0
    %p67 = por %p65, %p66
    %s69 = sadd.s32 %s68, 1
    %p72 = scmp.eq.s32.totalorder %s13, 1
    %p73 = scmp.ne.s32.totalorder %s68, %s70
    %p74 = scmp.eq.s32.totalorder %s13, 0
    %p75 = por %p73, %p74
    %p76 = scmp.ne.s32.totalorder %s68, %s70
    %p77 = scmp.eq.s32.totalorder %s18, 1
    %p78 = por %p76, %p77
    %p79 = scmp.ne.s32.totalorder %s70, %s71
    %p80 = scmp.eq.s32.totalorder %s18, 0
    %p81 = por %p79, %p80
    %p82 = scmp.ne.s32.totalorder %s70, %s71
    %p83 = scmp.eq.s32.totalorder %s19, 1
    %p84 = por %p82, %p83
    %p86 = scmp.ne.s32.totalorder %s71, %s85
    %p87 = scmp.eq.s32.totalorder %s19, 0
    %p88 = por %p86, %p87
    %s90 = sadd.s32 %s89, 1
    %p93 = scmp.eq.s32.totalorder %s13, 1
    %p94 = scmp.ne.s32.totalorder %s89, %s91
    %p95 = scmp.eq.s32.totalorder %s13, 0
    %p96 = por %p94, %p95
    %p97 = scmp.ne.s32.totalorder %s89, %s91
    %p98 = scmp.eq.s32.totalorder %s18, 1
    %p99 = por %p97, %p98
    %p100 = scmp.ne.s32.totalorder %s91, %s92
    %p101 = scmp.eq.s32.totalorder %s18, 0
    %p102 = por %p100, %p101
    %p103 = scmp.ne.s32.totalorder %s91, %s92
    %p104 = scmp.eq.s32.totalorder %s19, 1
    %p105 = por %p103, %p104
    %p107 = scmp.ne.s32.totalorder %s92, %s106
    %p108 = scmp.eq.s32.totalorder %s19, 0
    %p109 = por %p107, %p108
    %s111 = sadd.s32 %s110, 1
    %p114 = scmp.eq.s32.totalorder %s13, 1
    %p115 = scmp.ne.s32.totalorder %s110, %s112
    %p116 = scmp.eq.s32.totalorder %s13, 0
    %p117 = por %p115, %p116
    %p118 = scmp.ne.s32.totalorder %s110, %s112
    %p119 = scmp.eq.s32.totalorder %s18, 1
    %p120 = por %p118, %p119
    %p121 = scmp.ne.s32.totalorder %s112, %s113
    %p122 = scmp.eq.s32.totalorder %s18, 0
    %p123 = por %p121, %p122
    %p124 = scmp.ne.s32.totalorder %s112, %s113
    %p125 = scmp.eq.s32.totalorder %s19, 1
    %p126 = por %p124, %p125
    %p128 = scmp.ne.s32.totalorder %s113, %s127
    %p129 = scmp.eq.s32.totalorder %s19, 0
    %p130 = por %p128, %p129
    %s131 = ssub.s32 %s13, %s20
    %p132 = scmp.eq.s32.totalorder %s131, 0
    %s134 = sadd.s32 %s133, 1
    %s135 = scalar_select %p132, %s133, %s134
    %p138 = pneg %p132
    %p139 = scmp.eq.s32.totalorder %s13, 1
    %p140 = por %p138, %p139
    %p141 = scmp.ne.s32.totalorder %s133, %s136
    %p142 = scmp.eq.s32.totalorder %s13, 0
    %p143 = por %p141, %p142
    %p144 = scmp.ne.s32.totalorder %s133, %s136
    %p145 = scmp.eq.s32.totalorder %s18, 1
    %p146 = por %p144, %p145
    %p147 = scmp.ne.s32.totalorder %s136, %s137
    %p148 = scmp.eq.s32.totalorder %s18, 0
    %p149 = por %p147, %p148
    %p150 = scmp.ne.s32.totalorder %s136, %s137
    %p151 = scmp.eq.s32.totalorder %s19, 1
    %p152 = por %p150, %p151
    %p154 = scmp.ne.s32.totalorder %s137, %s153
    %p155 = scmp.eq.s32.totalorder %s19, 0
    %p156 = por %p154, %p155
    %p157 = scmp.le.s32.totalorder 1, %s13
    %p158 = scmp.lt.s32.totalorder %s13, 3
    %p159 = pnand %p157, %p158
    %p160 = pneg %p159
    // Predicated region
    $region9: #{model1_forward.1} parent=5 // pred_check
      _
    $region10: #{model1_forward.1} parent=5 // pred_check_branch
      %162 = sbr.rel (%p159) target = $region12
    $region11: #{model1_forward.1} parent=5 // pred_region
      %s163 = ssub.s32 %s13, 1
      // Predicated region
      $region13: #{model1_forward.1} parent=11 // pred_check
        %p164 = pneg %p60
      $region14: #{model1_forward.1} parent=11 // pred_check_branch
        %166 = sbr.rel (%p164) target = $region16
      $region15: #{model1_forward.1} parent=11 // pred_region
        _
      $region16: #{model1_forward.1} parent=11 // pred_fallthru
        _
      // Predicated region
      $region17: #{model1_forward.1} parent=11 // pred_check
        %p167 = pneg %p81
      $region18: #{model1_forward.1} parent=11 // pred_check_branch
        %169 = sbr.rel (%p167) target = $region20
      $region19: #{model1_forward.1} parent=11 // pred_region
        _
      $region20: #{model1_forward.1} parent=11 // pred_fallthru
        _
      // Predicated region
      $region21: #{model1_forward.1} parent=11 // pred_check
        %p170 = pneg %p102
      $region22: #{model1_forward.1} parent=11 // pred_check_branch
        %172 = sbr.rel (%p170) target = $region24
      $region23: #{model1_forward.1} parent=11 // pred_region
        _
      $region24: #{model1_forward.1} parent=11 // pred_fallthru
        _
      // Predicated region
      $region25: #{model1_forward.1} parent=11 // pred_check
        %p173 = pneg %p123
      $region26: #{model1_forward.1} parent=11 // pred_check_branch
        %175 = sbr.rel (%p173) target = $region28
      $region27: #{model1_forward.1} parent=11 // pred_region
        _
      $region28: #{model1_forward.1} parent=11 // pred_fallthru
        _
    $region12: #{model1_forward.1} parent=5 // pred_fallthru
      _
    %p176 = scmp.lt.s32.totalorder %s13, 2
    // Predicated region
    $region29: #{model1_forward.1} parent=5 // pred_check
      %p177 = pneg %p176
    $region30: #{model1_forward.1} parent=5 // pred_check_branch
      %179 = sbr.rel (%p177) target = $region32
    $region31: #{model1_forward.1} parent=5 // pred_region
      // Predicated region
      $region33: #{model1_forward.1} parent=31 // pred_check
        %p180 = pneg %p33
      $region34: #{model1_forward.1} parent=31 // pred_check_branch
        %182 = sbr.rel (%p180) target = $region36
      $region35: #{model1_forward.1} parent=31 // pred_region
        %s183 = smul.u32 4, %s13
        %p184 = scmp.lt.s32.totalorder %s183, 7
        %s185 = scalar_select %p184, %s183, 7
        %s186 = smul.addr %s185, 8
        %s187 = scalar_lea.vmem %s0, %s186
        %s188 = smul.u32 4, %s13
      $region36: #{model1_forward.1} parent=31 // pred_fallthru
        _
    $region32: #{model1_forward.1} parent=5 // pred_fallthru
      _
    %p189 = scmp.le.s32.totalorder 1, %s13
    %p190 = scmp.lt.s32.totalorder %s13, 3
    %p191 = pnand %p189, %p190
    %p192 = pneg %p191
    // Predicated region
    $region37: #{model1_forward.1} parent=5 // pred_check
      _
    $region38: #{model1_forward.1} parent=5 // pred_check_branch
      %194 = sbr.rel (%p191) target = $region40
    $region39: #{model1_forward.1} parent=5 // pred_region
      %s195 = ssub.s32 %s13, 1
      %s196 = smul.u32 4, %s18
      %p197 = scmp.lt.s32.totalorder %s196, 7
      %s198 = scalar_select %p197, %s196, 7
      %s199 = smul.addr %s198, 8
      %s200 = scalar_lea.vmem %s0, %s199
      %p201 = pneg %p39
      %p202 = pneg %p36
      %p203 = pneg %p60
      %p204 = pneg %p57
      %p205 = pneg %p81
      %p206 = pneg %p78
      %p207 = pneg %p102
      %p208 = pneg %p99
      %p209 = pneg %p123
      %p210 = pneg %p120
      %p211 = pneg %p149
      %p212 = pneg %p146
      %s213 = smul.u32 4, %s18
      %p214 = scmp.lt.s32.totalorder %s213, 7
      %s215 = scalar_select %p214, %s213, 7
      %s216 = smul.addr %s215, 8
      %s217 = scalar_lea.vmem %s5, %s216
      %s218 = smul.u32 4, %s18
      %p219 = scmp.lt.s32.totalorder %s218, 7
      %s220 = scalar_select %p219, %s218, 7
      %s221 = smul.addr %s220, 8
      %s222 = scalar_lea.vmem %s0, %s221
      %s223 = smul.u32 4, %s18
      %s224 = smul.u32 4, %s18
      %p225 = scmp.lt.s32.totalorder %s224, 7
      %s226 = scalar_select %p225, %s224, 7
      %s227 = smul.addr %s226, 8
      %s228 = scalar_lea.vmem %s5, %s227
      %s229 = smul.u32 4, %s18
      %v231 = vld [vmem:[%s222] sm:$0xff]
      %v232 = vld [vmem:[%s222 + $0x8] sm:$0xff]
      %v233 = vld [vmem:[%s222 + $0x10] sm:$0xff]
      %v234 = vld [vmem:[%s222 + $0x18] sm:$0xff]
      %v235 = vpack.c.bf16 %v232, %v231
      %v236 = vpack.c.bf16 %v234, %v233
      %v237 = vld [vmem:[%s1] sm:$0xff]
      %v238 = vld [vmem:[%s1 + $0x8] sm:$0xff]
      %v239 = vld [vmem:[%s1 + $0x10] sm:$0xff]
      %v240 = vld [vmem:[%s1 + $0x18] sm:$0xff]
      %v241 = vld [vmem:[%s1 + $0x20] sm:$0xff]
      %v242 = vld [vmem:[%s1 + $0x28] sm:$0xff]
      %v243 = vld [vmem:[%s1 + $0x30] sm:$0xff]
      %v244 = vld [vmem:[%s1 + $0x38] sm:$0xff]
      %v245 = vld [vmem:[%s1 + $0x40] sm:$0xff]
      %v246 = vld [vmem:[%s1 + $0x48] sm:$0xff]
      %v247 = vld [vmem:[%s1 + $0x50] sm:$0xff]
      %v248 = vld [vmem:[%s1 + $0x58] sm:$0xff]
      %v249 = vld [vmem:[%s1 + $0x60] sm:$0xff]
      %v250 = vld [vmem:[%s1 + $0x68] sm:$0xff]
      %v251 = vld [vmem:[%s1 + $0x70] sm:$0xff]
      %v252 = vld [vmem:[%s1 + $0x78] sm:$0xff]
      %v253 = vld [vmem:[%s1 + $0x80] sm:$0xff]
      %v254 = vld [vmem:[%s1 + $0x88] sm:$0xff]
      %v255 = vld [vmem:[%s1 + $0x90] sm:$0xff]
      %v256 = vld [vmem:[%s1 + $0x98] sm:$0xff]
      %v257 = vld [vmem:[%s1 + $0xa0] sm:$0xff]
      %v258 = vld [vmem:[%s1 + $0xa8] sm:$0xff]
      %v259 = vld [vmem:[%s1 + $0xb0] sm:$0xff]
      %v260 = vld [vmem:[%s1 + $0xb8] sm:$0xff]
      %v261 = vld [vmem:[%s1 + $0xc0] sm:$0xff]
      %v262 = vld [vmem:[%s1 + $0xc8] sm:$0xff]
      %v263 = vld [vmem:[%s1 + $0xd0] sm:$0xff]
      %v264 = vld [vmem:[%s1 + $0xd8] sm:$0xff]
      %v265 = vld [vmem:[%s1 + $0xe0] sm:$0xff]
      %v266 = vld [vmem:[%s1 + $0xe8] sm:$0xff]
      %v267 = vld [vmem:[%s1 + $0xf0] sm:$0xff]
      %v268 = vld [vmem:[%s1 + $0xf8] sm:$0xff]
      %v301 = vunpack.c.l.b16 %v237
      %v302 = vunpack.c.h.b16 %v237
      %v303 = vunpack.c.l.b16 %v238
      %v304 = vunpack.c.h.b16 %v238
      %v305 = vunpack.c.l.b16 %v239
      %v306 = vunpack.c.h.b16 %v239
      %v307 = vunpack.c.l.b16 %v240
      %v308 = vunpack.c.h.b16 %v240
      %v309 = vunpack.c.l.b16 %v241
      %v310 = vunpack.c.h.b16 %v241
      %v311 = vunpack.c.l.b16 %v242
      %v312 = vunpack.c.h.b16 %v242
      %v313 = vunpack.c.l.b16 %v243
      %v314 = vunpack.c.h.b16 %v243
      %v315 = vunpack.c.l.b16 %v244
      %v316 = vunpack.c.h.b16 %v244
      %v317 = vunpack.c.l.b16 %v245
      %v318 = vunpack.c.h.b16 %v245
      %v319 = vunpack.c.l.b16 %v246
      %v320 = vunpack.c.h.b16 %v246
      %v321 = vunpack.c.l.b16 %v247
      %v322 = vunpack.c.h.b16 %v247
      %v323 = vunpack.c.l.b16 %v248
      %v324 = vunpack.c.h.b16 %v248
      %v325 = vunpack.c.l.b16 %v249
      %v326 = vunpack.c.h.b16 %v249
      %v327 = vunpack.c.l.b16 %v250
      %v328 = vunpack.c.h.b16 %v250
      %v329 = vunpack.c.l.b16 %v251
      %v330 = vunpack.c.h.b16 %v251
      %v331 = vunpack.c.l.b16 %v252
      %v332 = vunpack.c.h.b16 %v252
      %v333 = vunpack.c.l.b16 %v253
      %v334 = vunpack.c.h.b16 %v253
      %v335 = vunpack.c.l.b16 %v254
      %v336 = vunpack.c.h.b16 %v254
      %v337 = vunpack.c.l.b16 %v255
      %v338 = vunpack.c.h.b16 %v255
      %v339 = vunpack.c.l.b16 %v256
      %v340 = vunpack.c.h.b16 %v256
      %v341 = vunpack.c.l.b16 %v257
      %v342 = vunpack.c.h.b16 %v257
      %v343 = vunpack.c.l.b16 %v258
      %v344 = vunpack.c.h.b16 %v258
      %v345 = vunpack.c.l.b16 %v259
      %v346 = vunpack.c.h.b16 %v259
      %v347 = vunpack.c.l.b16 %v260
      %v348 = vunpack.c.h.b16 %v260
      %v349 = vunpack.c.l.b16 %v261
      %v350 = vunpack.c.h.b16 %v261
      %v351 = vunpack.c.l.b16 %v262
      %v352 = vunpack.c.h.b16 %v262
      %v353 = vunpack.c.l.b16 %v263
      %v354 = vunpack.c.h.b16 %v263
      %v355 = vunpack.c.l.b16 %v264
      %v356 = vunpack.c.h.b16 %v264
      %v357 = vunpack.c.l.b16 %v265
      %v358 = vunpack.c.h.b16 %v265
      %v359 = vunpack.c.l.b16 %v266
      %v360 = vunpack.c.h.b16 %v266
      %v361 = vunpack.c.l.b16 %v267
      %v362 = vunpack.c.h.b16 %v267
      %v363 = vunpack.c.l.b16 %v268
      %v364 = vunpack.c.h.b16 %v268
      %v365 = vpack.c.b16 %v305, %v301
      %v366 = vpack.c.b16 %v306, %v302
      %v367 = vpack.c.b16 %v307, %v303
      %v368 = vpack.c.b16 %v308, %v304
      %v369 = vpack.c.b16 %v313, %v309
      %v370 = vpack.c.b16 %v314, %v310
      %v371 = vpack.c.b16 %v315, %v311
      %v372 = vpack.c.b16 %v316, %v312
      %v373 = vpack.c.b16 %v321, %v317
      %v374 = vpack.c.b16 %v322, %v318
      %v375 = vpack.c.b16 %v323, %v319
      %v376 = vpack.c.b16 %v324, %v320
      %v377 = vpack.c.b16 %v329, %v325
      %v378 = vpack.c.b16 %v330, %v326
      %v379 = vpack.c.b16 %v331, %v327
      %v380 = vpack.c.b16 %v332, %v328
      %v381 = vpack.c.b16 %v337, %v333
      %v382 = vpack.c.b16 %v338, %v334
      %v383 = vpack.c.b16 %v339, %v335
      %v384 = vpack.c.b16 %v340, %v336
      %v385 = vpack.c.b16 %v345, %v341
      %v386 = vpack.c.b16 %v346, %v342
      %v387 = vpack.c.b16 %v347, %v343
      %v388 = vpack.c.b16 %v348, %v344
      %v389 = vpack.c.b16 %v353, %v349
      %v390 = vpack.c.b16 %v354, %v350
      %v391 = vpack.c.b16 %v355, %v351
      %v392 = vpack.c.b16 %v356, %v352
      %v393 = vpack.c.b16 %v361, %v357
      %v394 = vpack.c.b16 %v362, %v358
      %v395 = vpack.c.b16 %v363, %v359
      %v396 = vpack.c.b16 %v364, %v360
      %429 = vmatprep.subr.bf16.mxu0 %v366
      %430 = vmatpush1.bf16.msra.mxu0 %v365
      %431 = vmatprep.subr.bf16.mxu0 %v370
      %432 = vmatpush1.bf16.msra.mxu0 %v369
      %433 = vmatprep.subr.bf16.mxu0 %v374
      %434 = vmatpush1.bf16.msra.mxu0 %v373
      %435 = vmatprep.subr.bf16.mxu0 %v378
      %436 = vmatpush1.bf16.msra.mxu0 %v377
      %437 = vmatprep.subr.bf16.mxu0 %v382
      %438 = vmatpush1.bf16.msra.mxu0 %v381
      %439 = vmatprep.subr.bf16.mxu0 %v386
      %440 = vmatpush1.bf16.msra.mxu0 %v385
      %441 = vmatprep.subr.bf16.mxu0 %v390
      %442 = vmatpush1.bf16.msra.mxu0 %v389
      %443 = vmatprep.subr.bf16.mxu0 %v394
      %444 = vmatpush1.bf16.msra.mxu0 %v393
      %445 = vmatprep.subr.bf16.mxu0 0
      %446 = vmatpush1.bf16.msra.mxu0 0
      %447 = vmatprep.subr.bf16.mxu0 0
      %448 = vmatpush1.bf16.msra.mxu0 0
      %449 = vmatprep.subr.bf16.mxu0 0
      %450 = vmatpush1.bf16.msra.mxu0 0
      %451 = vmatprep.subr.bf16.mxu0 0
      %452 = vmatpush1.bf16.msra.mxu0 0
      %453 = vmatprep.subr.bf16.mxu0 0
      %454 = vmatpush1.bf16.msra.mxu0 0
      %455 = vmatprep.subr.bf16.mxu0 0
      %456 = vmatpush1.bf16.msra.mxu0 0
      %457 = vmatprep.subr.bf16.mxu0 0
      %458 = vmatpush1.bf16.msra.mxu0 0
      %459 = vmatprep.subr.bf16.mxu0 0
      %460 = vmatpush1.bf16.msra.mxu0 0
      %461 = vmatprep.mubr.bf16.mxu0 0
      %462 = vmatmul.mubr.bf16.gmra.mrb[0].mxu0 %v235
      %v463 = vpop.f32.mrb[0].mxu0
      %v464 = vadd.f32 0.0, %v463
      %v465 = vpop.f32.mrb[0].mxu0
      %v466 = vadd.f32 0.0, %v465
      %v467 = vpop.f32.mrb[0].mxu0
      %v468 = vadd.f32 0.0, %v467
      %v469 = vpop.f32.mrb[0].mxu0
      %v470 = vadd.f32 0.0, %v469
      %471 = vmatprep.mubr.bf16.mxu0 0
      %472 = vmatmul.mubr.bf16.gmra.mrb[0].mxu0 %v236
      %v473 = vpop.f32.mrb[0].mxu0
      %v474 = vadd.f32 0.0, %v473
      %v475 = vpop.f32.mrb[0].mxu0
      %v476 = vadd.f32 0.0, %v475
      %v477 = vpop.f32.mrb[0].mxu0
      %v478 = vadd.f32 0.0, %v477
      %v479 = vpop.f32.mrb[0].mxu0
      %v480 = vadd.f32 0.0, %v479
      %481 = vdwg.mxu0
      %482 = vmatprep.subr.bf16.mxu0 %v368
      %483 = vmatpush1.bf16.msra.mxu0 %v367
      %484 = vmatprep.subr.bf16.mxu0 %v372
      %485 = vmatpush1.bf16.msra.mxu0 %v371
      %486 = vmatprep.subr.bf16.mxu0 %v376
      %487 = vmatpush1.bf16.msra.mxu0 %v375
      %488 = vmatprep.subr.bf16.mxu0 %v380
      %489 = vmatpush1.bf16.msra.mxu0 %v379
      %490 = vmatprep.subr.bf16.mxu0 %v384
      %491 = vmatpush1.bf16.msra.mxu0 %v383
      %492 = vmatprep.subr.bf16.mxu0 %v388
      %493 = vmatpush1.bf16.msra.mxu0 %v387
      %494 = vmatprep.subr.bf16.mxu0 %v392
      %495 = vmatpush1.bf16.msra.mxu0 %v391
      %496 = vmatprep.subr.bf16.mxu0 %v396
      %497 = vmatpush1.bf16.msra.mxu0 %v395
      %498 = vmatprep.subr.bf16.mxu0 0
      %499 = vmatpush1.bf16.msra.mxu0 0
      %500 = vmatprep.subr.bf16.mxu0 0
      %501 = vmatpush1.bf16.msra.mxu0 0
      %502 = vmatprep.subr.bf16.mxu0 0
      %503 = vmatpush1.bf16.msra.mxu0 0
      %504 = vmatprep.subr.bf16.mxu0 0
      %505 = vmatpush1.bf16.msra.mxu0 0
      %506 = vmatprep.subr.bf16.mxu0 0
      %507 = vmatpush1.bf16.msra.mxu0 0
      %508 = vmatprep.subr.bf16.mxu0 0
      %509 = vmatpush1.bf16.msra.mxu0 0
      %510 = vmatprep.subr.bf16.mxu0 0
      %511 = vmatpush1.bf16.msra.mxu0 0
      %512 = vmatprep.subr.bf16.mxu0 0
      %513 = vmatpush1.bf16.msra.mxu0 0
      %514 = vmatprep.mubr.bf16.mxu0 0
      %515 = vmatmul.mubr.bf16.gmra.mrb[0].mxu0 %v235
      %v516 = vpop.f32.mrb[0].mxu0
      %v517 = vadd.f32 0.0, %v516
      %v518 = vpop.f32.mrb[0].mxu0
      %v519 = vadd.f32 0.0, %v518
      %v520 = vpop.f32.mrb[0].mxu0
      %v521 = vadd.f32 0.0, %v520
      %v522 = vpop.f32.mrb[0].mxu0
      %v523 = vadd.f32 0.0, %v522
      %524 = vmatprep.mubr.bf16.mxu0 0
      %525 = vmatmul.mubr.bf16.gmra.mrb[0].mxu0 %v236
      %v526 = vpop.f32.mrb[0].mxu0
      %v527 = vadd.f32 0.0, %v526
      %v528 = vpop.f32.mrb[0].mxu0
      %v529 = vadd.f32 0.0, %v528
      %v530 = vpop.f32.mrb[0].mxu0
      %v531 = vadd.f32 0.0, %v530
      %v532 = vpop.f32.mrb[0].mxu0
      %v533 = vadd.f32 0.0, %v532
      %534 = vdwg.mxu0
      %v535 = vld [vmem:[%s2] sm:$0x1]
      %v537 = vlaneseq
      %v538 = vshrl.u32 %v537, 7
      %v539 = vsub.s32 0, %v538
      %v540 = vrot.slane %v535, %v539
      %v542 = vadd.f32 %v464, %v540
      %v543 = vadd.f32 %v468, %v540
      %v544 = vadd.f32 %v474, %v540
      %v545 = vadd.f32 %v478, %v540
      %v546 = vmax.f32 %v542, 0.0
      %v547 = vmax.f32 %v543, 0.0
      %v548 = vmax.f32 %v544, 0.0
      %v549 = vmax.f32 %v545, 0.0
      %v550 = vld [vmem:[%s3] sm:$0x1]
      %v552 = vlaneseq
      %v553 = vshrl.u32 %v552, 7
      %v554 = vsub.s32 0, %v553
      %v555 = vrot.slane %v550, %v554
      %v557 = vmul.f32 %v546, %v555
      %v558 = vmul.f32 %v547, %v555
      %v559 = vmul.f32 %v548, %v555
      %v560 = vmul.f32 %v549, %v555
      %561 = vadd.xlane.f32.xlu0 %v557
      %v562 = vpop.xlane.xlu0 %561
      %563 = vadd.xlane.f32.xlu0 %v558
      %v564 = vpop.xlane.xlu0 %563
      %565 = vadd.xlane.f32.xlu0 %v559
      %v566 = vpop.xlane.xlu0 %565
      %567 = vadd.xlane.f32.xlu0 %v560
      %v568 = vpop.xlane.xlu0 %567
      %v569 = vadd.f32 %v466, %v540
      %v570 = vadd.f32 %v470, %v540
      %v571 = vadd.f32 %v476, %v540
      %v572 = vadd.f32 %v480, %v540
      %v573 = vmax.f32 %v569, 0.0
      %v574 = vmax.f32 %v570, 0.0
      %v575 = vmax.f32 %v571, 0.0
      %v576 = vmax.f32 %v572, 0.0
      %v577 = vmul.f32 %v573, %v555
      %v578 = vmul.f32 %v574, %v555
      %v579 = vmul.f32 %v575, %v555
      %v580 = vmul.f32 %v576, %v555
      %581 = vadd.xlane.f32.xlu0 %v577
      %v582 = vpop.xlane.xlu0 %581
      %583 = vadd.xlane.f32.xlu0 %v578
      %v584 = vpop.xlane.xlu0 %583
      %585 = vadd.xlane.f32.xlu0 %v579
      %v586 = vpop.xlane.xlu0 %585
      %587 = vadd.xlane.f32.xlu0 %v580
      %v588 = vpop.xlane.xlu0 %587
      %v589 = vadd.f32 %v517, %v540
      %v590 = vadd.f32 %v521, %v540
      %v591 = vadd.f32 %v527, %v540
      %v592 = vadd.f32 %v531, %v540
      %v593 = vmax.f32 %v589, 0.0
      %v594 = vmax.f32 %v590, 0.0
      %v595 = vmax.f32 %v591, 0.0
      %v596 = vmax.f32 %v592, 0.0
      %v597 = vmul.f32 %v593, %v555
      %v598 = vmul.f32 %v594, %v555
      %v599 = vmul.f32 %v595, %v555
      %v600 = vmul.f32 %v596, %v555
      %601 = vadd.xlane.f32.xlu0 %v597
      %v602 = vpop.xlane.xlu0 %601
      %603 = vadd.xlane.f32.xlu0 %v598
      %v604 = vpop.xlane.xlu0 %603
      %605 = vadd.xlane.f32.xlu0 %v599
      %v606 = vpop.xlane.xlu0 %605
      %607 = vadd.xlane.f32.xlu0 %v600
      %v608 = vpop.xlane.xlu0 %607
      %v609 = vadd.f32 %v519, %v540
      %v610 = vadd.f32 %v523, %v540
      %v611 = vadd.f32 %v529, %v540
      %v612 = vadd.f32 %v533, %v540
      %v613 = vmax.f32 %v609, 0.0
      %v614 = vmax.f32 %v610, 0.0
      %v615 = vmax.f32 %v611, 0.0
      %v616 = vmax.f32 %v612, 0.0
      %v617 = vmul.f32 %v613, %v555
      %v618 = vmul.f32 %v614, %v555
      %v619 = vmul.f32 %v615, %v555
      %v620 = vmul.f32 %v616, %v555
      %621 = vadd.xlane.f32.xlu0 %v617
      %v622 = vpop.xlane.xlu0 %621
      %623 = vadd.xlane.f32.xlu0 %v618
      %v624 = vpop.xlane.xlu0 %623
      %625 = vadd.xlane.f32.xlu0 %v619
      %v626 = vpop.xlane.xlu0 %625
      %627 = vadd.xlane.f32.xlu0 %v620
      %v628 = vpop.xlane.xlu0 %627
      %vm629 = vcmask 7168
      %v630 = vsel %vm629, %v562, %v582
      %v631 = vsel %vm629, %v564, %v584
      %v632 = vsel %vm629, %v566, %v586
      %v633 = vsel %vm629, %v568, %v588
      %vm634 = vcmask 15360
      %v635 = vsel %vm634, %v630, %v602
      %v636 = vsel %vm634, %v631, %v604
      %v637 = vsel %vm634, %v632, %v606
      %v638 = vsel %vm634, %v633, %v608
      %vm639 = vcmask 23552
      %v640 = vsel %vm639, %v635, %v622
      %v641 = vsel %vm639, %v636, %v624
      %v642 = vsel %vm639, %v637, %v626
      %v643 = vsel %vm639, %v638, %v628
      %v644 = vld [vmem:[#allocation2] sm:$0x1]
      %v646 = vlaneseq
      %v647 = vshrl.u32 %v646, 7
      %v648 = vsub.s32 0, %v647
      %v649 = vrot.slane %v644, %v648
      %650 = vset.pattern.permute.xlu0 0
      %651 = vperm.xlu0 %650, %v649
      %v652 = vpop.permute.xlu0 %651
      %v654 = vadd.f32 %v640, %v652
      %v655 = vadd.f32 %v641, %v652
      %v656 = vadd.f32 %v642, %v652
      %v657 = vadd.f32 %v643, %v652
      %vm658 = vcmask 31744
      %659 = vst.msk [vmem:[%s228] sm:$0xff] %vm658, %v654
      %660 = vst.msk [vmem:[%s228 + $0x8] sm:$0xff] %vm658, %v655
      %661 = vst.msk [vmem:[%s228 + $0x10] sm:$0xff] %vm658, %v656
      %662 = vst.msk [vmem:[%s228 + $0x18] sm:$0xff] %vm658, %v657
      %s663 = smul.u32 4, %s18
      %p664 = scmp.lt.s32.totalorder %s663, 7
      %s665 = scalar_select %p664, %s663, 7
      %s666 = smul.addr %s665, 8
      %s667 = scalar_lea.vmem %s5, %s666
      // Predicated region
      $region41: #{model1_forward.1} parent=39 // pred_check
        %p668 = pneg %p146
      $region42: #{model1_forward.1} parent=39 // pred_check_branch
        %670 = sbr.rel (%p668) target = $region44
      $region43: #{model1_forward.1} parent=39 // pred_region
        %s671 = smul.u32 4, %s18
      $region44: #{model1_forward.1} parent=39 // pred_fallthru
        _
    $region40: #{model1_forward.1} parent=5 // pred_fallthru
      _
    %p672 = scmp.le.s32.totalorder 2, %s13
    // Predicated region
    $region45: #{model1_forward.1} parent=5 // pred_check
      %p673 = pneg %p672
    $region46: #{model1_forward.1} parent=5 // pred_check_branch
      %675 = sbr.rel (%p673) target = $region48
    $region47: #{model1_forward.1} parent=5 // pred_region
      %s676 = ssub.s32 %s13, 2
      // Predicated region
      $region49: #{model1_forward.1} parent=47 // pred_check
        %p677 = pneg %p152
      $region50: #{model1_forward.1} parent=47 // pred_check_branch
        %679 = sbr.rel (%p677) target = $region52
      $region51: #{model1_forward.1} parent=47 // pred_region
        %s680 = smul.u32 4, %s19
        %p681 = scmp.lt.s32.totalorder %s680, 7
        %s682 = scalar_select %p681, %s680, 7
        %s683 = smul.addr %s682, 8
        %s684 = scalar_lea.vmem %s5, %s683
      $region52: #{model1_forward.1} parent=47 // pred_fallthru
        _
    $region48: #{model1_forward.1} parent=5 // pred_fallthru
      _
  $region6: #{model1_forward.1} parent=0 // loop_footer
    %s17 = sadd.s32 1, %s13
  $region7: #{model1_forward.1} parent=0 // loop_footer_branch
    %12 = sbr.rel target = $region3
  $region8: #{model1_forward.1} parent=0 // loop_exit
    _

</llo_original>
